<compile_context>
chip_gen: v5e
topology: v5e:2x2
jax: 0.10.0
libtpu: 0.0.40
codegen_flags: <defaults>
</compile_context>

<pallas_src>
import functools

import jax
import jax.numpy as jnp
from jax.experimental import pallas as pl
from jax.experimental.pallas import tpu as pltpu


def _round_up(x, m):
    return (x + m - 1) // m * m


def _sentinel_kernel(xh_ref, w_ref, b_ref, m_ref, o_ref, acc_ref):
    """Computes one (tb, tn) output tile; grid axis 2 is the K reduction."""
    k = pl.program_id(2)

    @pl.when(k == 0)
    def _():
        acc_ref[...] = jnp.zeros_like(acc_ref)

    # Single fused GEMM on the MXU: bf16 x bf16 -> f32 accumulate.
    acc_ref[...] += jnp.dot(
        xh_ref[...].astype(jnp.bfloat16), w_ref[...],
        preferred_element_type=jnp.float32)

    @pl.when(k == pl.num_programs(2) - 1)
    def _():
        # Elementwise tail in f32 (EUP sigmoid/tanh, VPU multiply).
        g = jax.nn.sigmoid(acc_ref[...] + b_ref[...])
        s = g * jnp.tanh(m_ref[...].astype(jnp.float32))
        o_ref[...] = s.astype(o_ref.dtype)


def make_fused_params(wx, bx, wh, bh, *, tn=128, tk=128):
    """Fuse + pad parameters ONCE (at init, not per decode step).

    wx: (input_size, decoder_dim), wh: (decoder_dim, decoder_dim) stored
    pre-transposed; bx/bh: (1, decoder_dim).
    Returns W = [Wx; Wh] zero-padded to (Kp, Np) in bf16 and b = bx+bh padded
    to (1, Np) in f32, where Kp/Np are multiples of tk/tn (lane-dense N).
    """
    K = wx.shape[0] + wh.shape[0]
    N = wx.shape[1]
    Kp = _round_up(K, tk)
    Np = _round_up(N, tn)
    w = jnp.concatenate([wx, wh], axis=0)
    w = jnp.pad(w, ((0, Kp - K), (0, Np - N))).astype(jnp.bfloat16)
    b = jnp.pad((bx + bh).astype(jnp.float32), ((0, 0), (0, Np - N)))
    return w, b


@functools.partial(jax.jit, static_argnames=("tn", "tk"))
def sentinel_forward(x_t, h_last, m_t, w_fused, b_fused, *, tn=128, tk=128):
    """x_t: (B, input_size), h_last/m_t: (B, decoder_dim).
    w_fused: (Kp, Np) bf16, b_fused: (1, Np) f32 from make_fused_params.
    Returns s_t: (B, decoder_dim) in x_t.dtype.

    Note: tn=128 is the portable default (v5e MXU width); tn=256 is preferred on
    v6e/v7x when decoder_dim is large.
    """
    B, N = m_t.shape
    Kp, Np = w_fused.shape
    K = x_t.shape[1] + h_last.shape[1]

    # Batch tile: multiple of 8 sublanes (f32), capped at 128.
    tb = 128 if B > 128 else _round_up(B, 8)
    Bp = _round_up(B, tb)

    # Layout plumbing (concat + zero-pad); zeros in padded K/N leave results exact.
    xh = jnp.concatenate([x_t, h_last], axis=-1)
    xh = jnp.pad(xh, ((0, Bp - B), (0, Kp - K)))
    m_p = jnp.pad(m_t, ((0, Bp - B), (0, Np - N)))

    grid = (Bp // tb, Np // tn, Kp // tk)

    out = pl.pallas_call(
        _sentinel_kernel,
        out_shape=jax.ShapeDtypeStruct((Bp, Np), x_t.dtype),
        grid_spec=pltpu.PrefetchScalarGridSpec(
            num_scalar_prefetch=0,
            grid=grid,
            in_specs=[
                pl.BlockSpec((tb, tk), lambda i, j, k: (i, k)),  # xh = [x_t; h_last]
                pl.BlockSpec((tk, tn), lambda i, j, k: (k, j)),  # W  = [Wx; Wh] (bf16)
                pl.BlockSpec((1, tn), lambda i, j, k: (0, j)),   # b  = bx + bh  (f32)
                pl.BlockSpec((tb, tn), lambda i, j, k: (i, j)),  # m_t
            ],
            out_specs=pl.BlockSpec((tb, tn), lambda i, j, k: (i, j)),
            scratch_shapes=[pltpu.VMEM((tb, tn), jnp.float32)],
        ),
        compiler_params=pltpu.CompilerParams(
            dimension_semantics=("parallel", "parallel", "arbitrary")),
    )(xh, w_fused, b_fused, m_p)
    return out[:B, :N]


def xavier_uniform(key, fan_in, fan_out, dtype=jnp.float32):
    # matches torch.nn.init.xavier_uniform_ for a (fan_out, fan_in) Linear weight;
    # we store it transposed as (fan_in, fan_out).
    limit = jnp.sqrt(6.0 / (fan_in + fan_out))
    return jax.random.uniform(key, (fan_in, fan_out), dtype, minval=-limit, maxval=limit)


if __name__ == "__main__":
    # Small shapes consistent with the module: embed_dim=32 -> input_size=64.
    batch = 8
    embed_dim = 32
    input_size = 2 * embed_dim          # [ w_t ; v^g ]
    decoder_dim = 32

    key = jax.random.PRNGKey(0)
    k_x, k_h, k_m, k_wx, k_wh, k_bx, k_bh = jax.random.split(key, 7)

    x_t = jax.random.normal(k_x, (batch, input_size), jnp.float32)
    h_last = jax.random.normal(k_h, (batch, decoder_dim), jnp.float32)
    m_t = jax.random.normal(k_m, (batch, decoder_dim), jnp.float32)

    # Parameters (deterministic init). Weights xavier-uniform as in init_weights();
    # biases use PyTorch Linear's default U(-1/sqrt(fan_in), 1/sqrt(fan_in)).
    wx = xavier_uniform(k_wx, input_size, decoder_dim)
    wh = xavier_uniform(k_wh, decoder_dim, decoder_dim)
    bx = jax.random.uniform(k_bx, (1, decoder_dim), jnp.float32,
                            minval=-1.0 / jnp.sqrt(input_size),
                            maxval=1.0 / jnp.sqrt(input_size))
    bh = jax.random.uniform(k_bh, (1, decoder_dim), jnp.float32,
                            minval=-1.0 / jnp.sqrt(decoder_dim),
                            maxval=1.0 / jnp.sqrt(decoder_dim))

    # Fuse + pad params once (init-time), then run the kernel.
    w_fused, b_fused = make_fused_params(wx, bx, wh, bh)
    s_t = sentinel_forward(x_t, h_last, m_t, w_fused, b_fused)
    s_t = jax.block_until_ready(s_t)

    # Reference 1: matches the kernel's bf16 matmul inputs (tight check).
    xh = jnp.concatenate([x_t, h_last], axis=-1)
    w32 = jnp.concatenate([wx, wh], axis=0)
    xh_bf = xh.astype(jnp.bfloat16).astype(jnp.float32)
    w_bf = w32.astype(jnp.bfloat16).astype(jnp.float32)
    g_ref = jax.nn.sigmoid(xh_bf @ w_bf + (bx + bh))
    s_ref = g_ref * jnp.tanh(m_t)
    assert jnp.allclose(s_t, s_ref, atol=2e-3, rtol=2e-3), "mismatch vs bf16-matched reference"

    # Reference 2: exact f32 PyTorch semantics (loose check, bounds bf16 rounding).
    g_f32 = jax.nn.sigmoid(x_t @ wx + bx + h_last @ wh + bh)
    s_f32 = g_f32 * jnp.tanh(m_t)
    assert jnp.allclose(s_t, s_f32, atol=5e-2, rtol=5e-2), "mismatch vs f32 reference"

    print("KERNEL_OK")
</pallas_src>

<mosaic_0001>
module attributes {stable_mosaic.version = 11 : i64} {
  func.func @_sentinel_kernel(%arg0: i32, %arg1: i32, %arg2: i32, %arg3: memref<8x128xf32, #tpu.memory_space<vmem>>, %arg4: memref<128x128xbf16, #tpu.memory_space<vmem>>, %arg5: memref<1x128xf32, #tpu.memory_space<vmem>>, %arg6: memref<8x128xf32, #tpu.memory_space<vmem>>, %arg7: memref<8x128xf32, #tpu.memory_space<vmem>>, %arg8: memref<8x128xf32, #tpu.memory_space<vmem>>) attributes {dimension_semantics = [#tpu.dimension_semantics<parallel>, #tpu.dimension_semantics<parallel>, #tpu.dimension_semantics<arbitrary>], iteration_bounds = array<i64: 1, 1, 1>, scalar_prefetch = 0 : i64, scratch_operands = 1 : i64, tpu.core_type = #tpu.core_type<tc>, window_params = [{transform_indices = @transform_0, window_bounds = array<i64: 8, 128>}, {transform_indices = @transform_1, window_bounds = array<i64: 128, 128>}, {transform_indices = @transform_2, window_bounds = array<i64: 1, 128>}, {transform_indices = @transform_3, window_bounds = array<i64: 8, 128>}, {transform_indices = @transform_4, window_bounds = array<i64: 8, 128>}]} {
    %c0_i32 = arith.constant 0 : i32
    %0 = arith.cmpi eq, %arg2, %c0_i32 : i32
    %1 = arith.extui %0 : i1 to i32
    %c0_i32_0 = arith.constant 0 : i32
    %2 = arith.cmpi ne, %1, %c0_i32_0 : i32
    scf.if %2 {
      %cst_10 = arith.constant 0.000000e+00 : f32
      %13 = vector.broadcast %cst_10 : f32 to vector<8x128xf32>
      %c0_11 = arith.constant 0 : index
      %c0_12 = arith.constant 0 : index
      %14 = vector.load %arg8[%c0_11, %c0_12] : memref<8x128xf32, #tpu.memory_space<vmem>>, vector<8x128xf32>
      tpu.vector_store %arg8[%c0_11, %c0_12], %13 {strides = array<i32>} : memref<8x128xf32, #tpu.memory_space<vmem>>, vector<8x128xf32>,
    } else {
    }
    %c0 = arith.constant 0 : index
    %c0_1 = arith.constant 0 : index
    %3 = vector.load %arg8[%c0, %c0_1] : memref<8x128xf32, #tpu.memory_space<vmem>>, vector<8x128xf32>
    %c0_2 = arith.constant 0 : index
    %c0_3 = arith.constant 0 : index
    %4 = vector.load %arg3[%c0_2, %c0_3] : memref<8x128xf32, #tpu.memory_space<vmem>>, vector<8x128xf32>
    %5 = arith.truncf %4 : vector<8x128xf32> to vector<8x128xbf16>
    %c0_4 = arith.constant 0 : index
    %c0_5 = arith.constant 0 : index
    %6 = vector.load %arg4[%c0_4, %c0_5] : memref<128x128xbf16, #tpu.memory_space<vmem>>, vector<128x128xbf16>
    %cst = arith.constant dense<0.000000e+00> : vector<8x128xf32>
    %7 = tpu.matmul %5, %6, %cst {dimension_numbers = #tpu.dot_dimension_numbers<[1], [0], [0], [1], [0, 0, 1, 1], [], []>} : vector<8x128xbf16>, vector<128x128xbf16>, vector<8x128xf32> -> vector<8x128xf32>
    %8 = arith.addf %3, %7 : vector<8x128xf32>
    %c0_6 = arith.constant 0 : index
    %c0_7 = arith.constant 0 : index
    %9 = vector.load %arg8[%c0_6, %c0_7] : memref<8x128xf32, #tpu.memory_space<vmem>>, vector<8x128xf32>
    tpu.vector_store %arg8[%c0_6, %c0_7], %8 {strides = array<i32>} : memref<8x128xf32, #tpu.memory_space<vmem>>, vector<8x128xf32>,
    %c0_i32_8 = arith.constant 0 : i32
    %10 = arith.cmpi eq, %arg2, %c0_i32_8 : i32
    %11 = arith.extui %10 : i1 to i32
    %c0_i32_9 = arith.constant 0 : i32
    %12 = arith.cmpi ne, %11, %c0_i32_9 : i32
    scf.if %12 {
      %c0_10 = arith.constant 0 : index
      %c0_11 = arith.constant 0 : index
      %13 = vector.load %arg8[%c0_10, %c0_11] : memref<8x128xf32, #tpu.memory_space<vmem>>, vector<8x128xf32>
      %c0_12 = arith.constant 0 : index
      %c0_13 = arith.constant 0 : index
      %14 = vector.load %arg5[%c0_12, %c0_13] : memref<1x128xf32, #tpu.memory_space<vmem>>, vector<1x128xf32>
      %15 = vector.broadcast %14 : vector<1x128xf32> to vector<8x128xf32>
      %16 = arith.addf %13, %15 : vector<8x128xf32>
      %17 = arith.negf %16 : vector<8x128xf32>
      %18 = math.exp %17 : vector<8x128xf32>
      %cst_14 = arith.constant 1.000000e+00 : f32
      %19 = vector.broadcast %cst_14 : f32 to vector<8x128xf32>
      %20 = arith.addf %19, %18 : vector<8x128xf32>
      %21 = arith.divf %19, %20 : vector<8x128xf32>
      %c0_15 = arith.constant 0 : index
      %c0_16 = arith.constant 0 : index
      %22 = vector.load %arg6[%c0_15, %c0_16] : memref<8x128xf32, #tpu.memory_space<vmem>>, vector<8x128xf32>
      %23 = math.tanh %22 : vector<8x128xf32>
      %24 = arith.mulf %21, %23 : vector<8x128xf32>
      %c0_17 = arith.constant 0 : index
      %c0_18 = arith.constant 0 : index
      %25 = vector.load %arg7[%c0_17, %c0_18] : memref<8x128xf32, #tpu.memory_space<vmem>>, vector<8x128xf32>
      tpu.vector_store %arg7[%c0_17, %c0_18], %24 {strides = array<i32>} : memref<8x128xf32, #tpu.memory_space<vmem>>, vector<8x128xf32>,
    } else {
    }
    return
  }
  func.func @transform_0(%arg0: i32, %arg1: i32, %arg2: i32) -> (i32, i32) {
    %c0_i32 = arith.constant 0 : i32
    return %arg0, %arg2 : i32, i32
  }
  func.func @transform_1(%arg0: i32, %arg1: i32, %arg2: i32) -> (i32, i32) {
    %c0_i32 = arith.constant 0 : i32
    return %arg2, %arg1 : i32, i32
  }
  func.func @transform_2(%arg0: i32, %arg1: i32, %arg2: i32) -> (i32, i32) {
    %c0_i32 = arith.constant 0 : i32
    %c0_i32_0 = arith.constant 0 : i32
    return %c0_i32, %arg1 : i32, i32
  }
  func.func @transform_3(%arg0: i32, %arg1: i32, %arg2: i32) -> (i32, i32) {
    %c0_i32 = arith.constant 0 : i32
    return %arg0, %arg1 : i32, i32
  }
  func.func @transform_4(%arg0: i32, %arg1: i32, %arg2: i32) -> (i32, i32) {
    %c0_i32 = arith.constant 0 : i32
    return %arg0, %arg1 : i32, i32
  }
}

</mosaic_0001>

<llo_original>
// kernel: sentinel_forward.1
$region0: #{sentinel_forward.1}
  #allocation0 [shape = 'u32[]', space=smem, size = 0x4, offset = 0x4, fixed_abs, tag = 'smem constant byte address 0x4 - core index']
  #allocation1 [shape = 'u32[72,128]{1,0:T(1,128)}', space=vmem, size = 0x9000, scoped, tag = 'internal scratch']
  #allocation2 [shape = 'f32[8,128]{1,0:T(8,128)}', space=vmem, size = 0x1000, scoped, tag = 'scratch operand']
  %s0 = inlined_call_operand.vmem [shape: f32[8,128], index: 0, kind: input, shape index: {}]
  %s1 = inlined_call_operand.hbm [shape: bf16[128,128], index: 1, kind: input, shape index: {}]
  %s2 = inlined_call_operand.vmem [shape: f32[1,128], index: 2, kind: input, shape index: {}]
  %s3 = inlined_call_operand.vmem [shape: f32[8,128], index: 3, kind: input, shape index: {}]
  %s4 = inlined_call_operand.hbm [shape: f32[8,128], index: 4, kind: output, shape index: {}]
  %s5 = sld [smem:[#allocation0]]
  $region38: #{sentinel_forward.1} parent=0
    _
  %s7 = ssub.s32 1, %s5
  %s8 = scalar_select 0, %s7, %s5
  $region1: #{sentinel_forward.1} parent=0
    #allocation3 [shape = 'u8[32768]{0}', space=vmem, size = 0x8000, scoped, tag = 'input window, operand 1, single buffered']
    #allocation4 [shape = 's32[1]{0}', space=sflag, size = 0x4, scoped, tag = 'scoped memory for sentinel_forward.1']
    #allocation5 [shape = 's32[1]{0}', space=sflag, size = 0x4, scoped, tag = 'scoped memory for sentinel_forward.1']
    #allocation6 [shape = 'u8[4096]{0}', space=vmem, size = 0x1000, scoped, tag = 'output window, operand 0, single buffered']
    %9 = vsyncpa [#allocation4], 0
    %10 = vsyncpa [#allocation5], 0
    // Predicated region
    $region2: #{sentinel_forward.1} parent=1 // pred_check
      _
    $region3: #{sentinel_forward.1} parent=1 // pred_check_branch
      %12 = sbr.rel (0) target = $region5
    $region4: #{sentinel_forward.1} parent=1 // pred_region
      _
    $region5: #{sentinel_forward.1} parent=1 // pred_fallthru
      _
    // Predicated region
    $region6: #{sentinel_forward.1} parent=1 // pred_check
      _
    $region7: #{sentinel_forward.1} parent=1 // pred_check_branch
      %14 = sbr.rel (0) target = $region9
    $region8: #{sentinel_forward.1} parent=1 // pred_region
      %16 = vsyncadd [#allocation4], 0
      %s17 = sshll.u32 %s1, 4
      %s18 = int_to_ptr.hbm [resolvable:$true] %s17
      %s19 = sshll.u32 [#allocation3], 4
      %s20 = int_to_ptr.vmem [resolvable:$true] %s19
      %25 = dma.hbm_to_vmem [thread:$0]  %s18, 1024, %s20, [#allocation4], 64, 64, 4
    $region9: #{sentinel_forward.1} parent=1 // pred_fallthru
      _
    // Predicated region
    $region10: #{sentinel_forward.1} parent=1 // pred_check
      _
    $region11: #{sentinel_forward.1} parent=1 // pred_check_branch
      %27 = sbr.rel (0) target = $region13
    $region12: #{sentinel_forward.1} parent=1 // pred_region
      _
    $region13: #{sentinel_forward.1} parent=1 // pred_fallthru
      _
    // Predicated region
    $region14: #{sentinel_forward.1} parent=1 // pred_check
      _
    $region15: #{sentinel_forward.1} parent=1 // pred_check_branch
      %29 = sbr.rel (0) target = $region17
    $region16: #{sentinel_forward.1} parent=1 // pred_region
      _
    $region17: #{sentinel_forward.1} parent=1 // pred_fallthru
      _
    // Predicated region
    $region18: #{sentinel_forward.1} parent=1 // pred_check
      _
    $region19: #{sentinel_forward.1} parent=1 // pred_check_branch
      %31 = sbr.rel (0) target = $region21
    $region20: #{sentinel_forward.1} parent=1 // pred_region
      %33 = dma.done [#allocation4], 1024
    $region21: #{sentinel_forward.1} parent=1 // pred_fallthru
      _
    %p34 = scmp.eq.s32.totalorder 0, 0
    // Predicated region
    $region22: #{sentinel_forward.1} parent=1 // pred_check
      %p35 = pneg %p34
    $region23: #{sentinel_forward.1} parent=1 // pred_check_branch
      %37 = sbr.rel (%p35) target = $region25
    $region24: #{sentinel_forward.1} parent=1 // pred_region
      %38 = vst [vmem:[#allocation2] sm:$0xff] 0.0
    $region25: #{sentinel_forward.1} parent=1 // pred_fallthru
      _
    %v39 = vld [vmem:[#allocation2] sm:$0xff]
    %v40 = vld [vmem:[%s0] sm:$0xff]
    %v41 = vpack.c.bf16 %v40, %v40
    %v42 = vld [vmem:[#allocation3] sm:$0xf]
    %v43 = vld [vmem:[#allocation3 + $0x4] sm:$0xf]
    %v44 = vld [vmem:[#allocation3 + $0x8] sm:$0xf]
    %v45 = vld [vmem:[#allocation3 + $0xc] sm:$0xf]
    %v46 = vld [vmem:[#allocation3 + $0x10] sm:$0xf]
    %v47 = vld [vmem:[#allocation3 + $0x14] sm:$0xf]
    %v48 = vld [vmem:[#allocation3 + $0x18] sm:$0xf]
    %v49 = vld [vmem:[#allocation3 + $0x1c] sm:$0xf]
    %v50 = vld [vmem:[#allocation3 + $0x20] sm:$0xf]
    %v51 = vld [vmem:[#allocation3 + $0x24] sm:$0xf]
    %v52 = vld [vmem:[#allocation3 + $0x28] sm:$0xf]
    %v53 = vld [vmem:[#allocation3 + $0x2c] sm:$0xf]
    %v54 = vld [vmem:[#allocation3 + $0x30] sm:$0xf]
    %v55 = vld [vmem:[#allocation3 + $0x34] sm:$0xf]
    %v56 = vld [vmem:[#allocation3 + $0x38] sm:$0xf]
    %v57 = vld [vmem:[#allocation3 + $0x3c] sm:$0xf]
    %v74 = vunpack.c.l.b16 %v42
    %v75 = vunpack.c.l.b16 %v43
    %v76 = vunpack.c.l.b16 %v44
    %v77 = vunpack.c.l.b16 %v45
    %v78 = vunpack.c.l.b16 %v46
    %v79 = vunpack.c.l.b16 %v47
    %v80 = vunpack.c.l.b16 %v48
    %v81 = vunpack.c.l.b16 %v49
    %v82 = vunpack.c.l.b16 %v50
    %v83 = vunpack.c.l.b16 %v51
    %v84 = vunpack.c.l.b16 %v52
    %v85 = vunpack.c.l.b16 %v53
    %v86 = vunpack.c.l.b16 %v54
    %v87 = vunpack.c.l.b16 %v55
    %v88 = vunpack.c.l.b16 %v56
    %v89 = vunpack.c.l.b16 %v57
    %v90 = vpack.c.b16 %v75, %v74
    %v91 = vpack.c.b16 %v77, %v76
    %v92 = vpack.c.b16 %v79, %v78
    %v93 = vpack.c.b16 %v81, %v80
    %v94 = vpack.c.b16 %v83, %v82
    %v95 = vpack.c.b16 %v85, %v84
    %v96 = vpack.c.b16 %v87, %v86
    %v97 = vpack.c.b16 %v89, %v88
    %106 = vmatpush.bf16.msra.mxu0 %v97
    %107 = vmatpush.bf16.msra.mxu0 %v96
    %108 = vmatpush.bf16.msra.mxu0 %v95
    %109 = vmatpush.bf16.msra.mxu0 %v94
    %110 = vmatpush.bf16.msra.mxu0 %v93
    %111 = vmatpush.bf16.msra.mxu0 %v92
    %112 = vmatpush.bf16.msra.mxu0 %v91
    %113 = vmatpush.bf16.msra.mxu0 %v90
    %114 = vmatmul.bf16.gmra.mxu0 %v41
    %v115 = vpop.f32.mrf.mxu0
    %v116 = vadd.f32 0.0, %v115
    %v117 = vpop.f32.mrf.mxu0
    %118 = vdwg.mxu0
    %v119 = vadd.f32 %v39, %v116
    %120 = vst [vmem:[#allocation2] sm:$0xff] %v119
    // Predicated region
    $region26: #{sentinel_forward.1} parent=1 // pred_check
      %p121 = pneg %p34
    $region27: #{sentinel_forward.1} parent=1 // pred_check_branch
      %123 = sbr.rel (%p121) target = $region29
    $region28: #{sentinel_forward.1} parent=1 // pred_region
      %v124 = vld [vmem:[#allocation2] sm:$0xff]
      %v125 = vld [vmem:[%s2] sm:$0x1]
      %v127 = vperm.slane %v125, 0
      %v129 = vadd.f32 %v124, %v127
      %v130 = vxor.u32 %v129, 2147483648
      %v131 = vmul.f32 %v130, 1.442695
      %v132 = vpow.pop %v131
      %v133 = vadd.f32 %v132, 1.0
      %v134 = vrcp.pop %v133
      %v135 = vmul.f32 %v133, %v134
      %v136 = vsub.f32 1.0, %v135
      %v137 = vmul.f32 %v134, %v136
      %v138 = vadd.f32 %v134, %v137
      %vm139 = vweird.f32 %v133
      %vm140 = vweird.f32 %v134
      %vm141 = vmor %vm139, %vm140
      %v142 = vsel %vm141, %v134, %v138
      %v143 = vand.u32 2147483647, %v133
      %vm144 = vcmp.eq.f32.partialorder %v143, 8.507059e+37
      %v145 = vand.u32 %v133, 2147483648
      %v146 = vor.u32 1.1754944e-38, %v145
      %v147 = vsel %vm144, %v146, %v142
      %v148 = vmul.f32 1.0, %v147
      %v149 = vld [vmem:[%s3] sm:$0xff]
      %v150 = vtanh.pop %v149
      %v151 = vmul.f32 %v148, %v150
      %152 = vst [vmem:[#allocation6] sm:$0xff] %v151
    $region29: #{sentinel_forward.1} parent=1 // pred_fallthru
      _
    // Predicated region
    $region30: #{sentinel_forward.1} parent=1 // pred_check
      _
    $region31: #{sentinel_forward.1} parent=1 // pred_check_branch
      %154 = sbr.rel (0) target = $region33
    $region32: #{sentinel_forward.1} parent=1 // pred_region
      %156 = vsyncadd [#allocation5], 0
      %s158 = sshll.u32 [#allocation6], 4
      %s159 = int_to_ptr.vmem [resolvable:$true] %s158
      %s160 = sshll.u32 %s4, 4
      %s161 = int_to_ptr.hbm [resolvable:$true] %s160
      %163 = dma.vmem_to_hbm [thread:$0]  %s159, 128, %s161, [#allocation5]
    $region33: #{sentinel_forward.1} parent=1 // pred_fallthru
      _
    // Predicated region
    $region34: #{sentinel_forward.1} parent=1 // pred_check
      _
    $region35: #{sentinel_forward.1} parent=1 // pred_check_branch
      %165 = sbr.rel (0) target = $region37
    $region36: #{sentinel_forward.1} parent=1 // pred_region
      %167 = dma.done [#allocation5], 128
    $region37: #{sentinel_forward.1} parent=1 // pred_fallthru
      _
    %168 = vsyncpa [#allocation4], 1
    %169 = vsyncpa [#allocation5], 1

</llo_original>
